<compile_context>
chip_gen: v7x
topology: tpu7x:2x2x1
jax: 0.10.0
libtpu: 0.0.40
codegen_flags: <defaults>
</compile_context>

<pallas_src>
import jax
import jax.numpy as jnp
import numpy as np
from jax.experimental import pallas as pl
from jax.experimental.pallas import tpu as pltpu

_NEG_BIG = -1e30  # finite "minus infinity" sentinel for masked logits


def _attentive_agg_kernel(q_ref, v_ref, mask_ref, wt_ref, b_ref, o_ref,
                          m_sc, l_sc, acc_sc):
    # q_ref:    (TB, D)
    # v_ref:    (TB, C, D)   one sequence chunk, native dtype
    # mask_ref: (TB, C)
    # wt_ref:   (D, D)       weight already transposed to (in, out), v dtype
    # b_ref:    (1, D)       f32
    # o_ref:    (TB, D)
    # m_sc/l_sc:(TB, 1) f32  running max / running denominator
    # acc_sc:   (TB, D) f32  running numerator
    c = pl.program_id(1)

    @pl.when(c == 0)
    def _init():
        m_sc[...] = jnp.full_like(m_sc, _NEG_BIG)
        l_sc[...] = jnp.zeros_like(l_sc)
        acc_sc[...] = jnp.zeros_like(acc_sc)

    v = v_ref[...]                                   # [TB, C, D] native dtype
    tb, cs, d = v.shape
    q = q_ref[...].astype(jnp.float32)               # [TB, D]
    wt = wt_ref[...]                                 # [D, D] (in, out)
    b = b_ref[...]                                   # [1, D] f32

    # k = tanh(v @ W^T + b): ONE [TB*C, D] x [D, D] MXU GEMM (f32 accumulate).
    # C is a multiple of the sublane pack, so the reshapes are free merges.
    k = jnp.tanh(
        jnp.dot(v.reshape(tb * cs, d), wt, preferred_element_type=jnp.float32)
        + b
    ).reshape(tb, cs, d)                             # f32 [TB, C, D]

    # logits[b, s] = <k[b, s, :], q[b, :]>  (VPU multiply + lane reduce).
    logits = jnp.sum(k * q[:, None, :], axis=-1)     # f32 [TB, C]
    logits = jnp.where(mask_ref[...] == 0, jnp.float32(_NEG_BIG), logits)

    # Online softmax across sequence chunks.
    m_prev = m_sc[...]                               # [TB, 1]
    m_new = jnp.maximum(m_prev, jnp.max(logits, axis=-1, keepdims=True))
    alpha = jnp.exp(m_prev - m_new)                  # [TB, 1]
    p = jnp.exp(logits - m_new)                      # [TB, C]
    l_sc[...] = alpha * l_sc[...] + jnp.sum(p, axis=-1, keepdims=True)
    # Output accumulation = VPU weighted reduce over the chunk (no M=1 matmul).
    acc_sc[...] = alpha * acc_sc[...] + jnp.sum(
        p[:, :, None] * v.astype(jnp.float32), axis=1)
    m_sc[...] = m_new

    @pl.when(c == pl.num_programs(1) - 1)
    def _finalize():
        o_ref[...] = (acc_sc[...]
                      * pl.reciprocal(l_sc[...], approx=True)).astype(o_ref.dtype)


def _build_pallas_call(*, TB, C, D, n_blocks, n_chunks, out_dtype,
                       vmem_limit, deep_v, use_pipeline_modes):
    v_mode = pl.Buffered(3) if (deep_v and use_pipeline_modes) else None
    p_mode = pl.Buffered(1) if use_pipeline_modes else None

    def spec(shape, imap, mode):
        if mode is None:
            return pl.BlockSpec(shape, imap)
        return pl.BlockSpec(shape, imap, pipeline_mode=mode)

    grid_spec = pltpu.PrefetchScalarGridSpec(
        num_scalar_prefetch=0,
        grid=(n_blocks, n_chunks),
        in_specs=[
            pl.BlockSpec((TB, D), lambda b, c: (b, 0)),        # q
            spec((TB, C, D), lambda b, c: (b, c, 0), v_mode),  # v chunk
            pl.BlockSpec((TB, C), lambda b, c: (b, c)),        # mask chunk
            spec((D, D), lambda b, c: (0, 0), p_mode),         # W^T (shared)
            spec((1, D), lambda b, c: (0, 0), p_mode),         # bias (shared)
        ],
        out_specs=pl.BlockSpec((TB, D), lambda b, c: (b, 0)),
        scratch_shapes=[
            pltpu.VMEM((TB, 1), jnp.float32),    # running max  m
            pltpu.VMEM((TB, 1), jnp.float32),    # running sum  l
            pltpu.VMEM((TB, D), jnp.float32),    # output accumulator
        ],
    )
    return pl.pallas_call(
        _attentive_agg_kernel,
        out_shape=jax.ShapeDtypeStruct((n_blocks * TB, D), out_dtype),
        grid_spec=grid_spec,
        compiler_params=pltpu.CompilerParams(
            dimension_semantics=("parallel", "arbitrary"),
            vmem_limit_bytes=vmem_limit,
        ),
    )


def attentive_aggregation(q, v, mask, weight, bias, *, block_b=None, chunk_s=None):
    """q: [B, D], v: [B, S, D], mask: [B, S] (or None) -> [B, D].

    weight/bias are torch-style nn.Linear(D, D) params: weight [out, in],
    bias [D].  block_b (if given) should be a multiple of 8 or equal B;
    chunk_s (if given) should be a multiple of 128 or cover the whole sequence.
    """
    B, S, D = v.shape
    v_dtype = v.dtype
    it = jnp.dtype(v_dtype).itemsize
    pack = max(8, 32 // it)                      # sublane pack: 8 f32 / 16 bf16

    if mask is None:
        mask = jnp.ones((B, S), jnp.int32)

    # --- architecture-aware VMEM budget (v7x: 64 MiB, v5e/v6e: 128 MiB) -----
    try:
        vmem_cap = int(pltpu.get_tpu_info().vmem_capacity_bytes)
    except Exception:
        vmem_cap = 64 * 1024 * 1024              # conservative (v7x) default
    vmem_target = min(vmem_cap // 2, 64 * 1024 * 1024)
    chunk_budget = int(vmem_target * 0.55)

    # Cost per (batch row, seq position) of one chunk step: pipeline-buffered
    # native-dtype v block plus ~3 f32-sized in-kernel temporaries
    # (k chunk, k*q product, v upcast inside the weighted reduce).
    bytes_per_elem = D * (2 * it + 3 * 4)
    S_pack = -(-S // pack) * pack

    # --- batch rows per grid step --------------------------------------------
    if B < 8:
        tb_pref = B
    else:
        tb_pref = min(B // 8 * 8, 128)
        if B >= 16:                               # keep >= 2 batch blocks so the
            tb_pref = min(tb_pref, max(8, (B // 2) // 8 * 8))  # 2 TCs both work
    TB = int(block_b) if block_b is not None else tb_pref

    # --- sequence rows per grid step ------------------------------------------
    if chunk_s is not None:
        C = int(chunk_s)
    elif TB * S_pack * bytes_per_elem <= chunk_budget:
        C = S_pack                                # whole (pack-padded) sequence
    else:
        tb_fit = chunk_budget // (S_pack * bytes_per_elem)
        if block_b is None and B >= 8 and tb_fit >= 8:
            TB = min(TB, tb_fit // 8 * 8)         # shrink TB, keep one S pass
            C = S_pack
        else:
            if block_b is None and B >= 8:
                TB = 8                            # stream the sequence instead
            c_fit = chunk_budget // max(1, TB * bytes_per_elem)
            C = max(128, c_fit // 128 * 128)      # lane-aligned chunks
            C = min(C, -(-S // 128) * 128)

    n_chunks = -(-S // C)
    S_pad = n_chunks * C
    n_blocks = -(-B // TB)
    B_pad = n_blocks * TB

    # --- pad; padded rows / positions are fully masked (sentinel keeps them
    #     NaN-free) and sliced off below --------------------------------------
    if B_pad != B or S_pad != S:
        q = jnp.pad(q, ((0, B_pad - B), (0, 0)))
        v = jnp.pad(v, ((0, B_pad - B), (0, S_pad - S), (0, 0)))
        mask = jnp.pad(mask, ((0, B_pad - B), (0, S_pad - S)))

    # --- params: transpose ONCE, match v's dtype so bf16 inputs hit the fast
    #     bf16 MXU path (f32 accumulation via preferred_element_type) ---------
    weight_t = jnp.transpose(weight)
    if jnp.issubdtype(v_dtype, jnp.floating):
        weight_t = weight_t.astype(v_dtype)
    bias2d = bias.reshape(1, D).astype(jnp.float32)

    # --- VMEM accounting including in-kernel f32 intermediates ---------------
    mask_it = jnp.dtype(mask.dtype).itemsize
    q_it = jnp.dtype(q.dtype).itemsize
    deep_v = (D <= 256) and (n_blocks * n_chunks >= 3)   # memory-bound: 3-deep v
    v_bufs = 3 if deep_v else 2
    est = (
        v_bufs * TB * C * D * it                          # v chunk buffers
        + 3 * TB * C * D * 4                              # f32 k / k*q / v upcast
        + 2 * TB * C * mask_it                            # mask chunk buffers
        + 2 * TB * D * q_it                               # q block buffers
        + 2 * TB * D * it                                 # output block buffers
        + 2 * D * D * jnp.dtype(weight_t.dtype).itemsize  # W^T
        + 2 * D * 4                                       # bias
        + TB * D * 4 + 2 * TB * 4                         # acc / m / l scratch
    )
    vmem_limit = int(min(max(2 * est, 16 * 1024 * 1024),
                         vmem_cap - 8 * 1024 * 1024))

    args = (q, v, mask, weight_t, bias2d)
    kwargs = dict(TB=TB, C=C, D=D, n_blocks=n_blocks, n_chunks=n_chunks,
                  out_dtype=v_dtype, vmem_limit=vmem_limit, deep_v=deep_v)
    try:
        out = _build_pallas_call(use_pipeline_modes=True, **kwargs)(*args)
        out = jax.block_until_ready(out)
    except Exception:
        # pipeline_mode hints not supported on this jax/libtpu: plain specs.
        out = _build_pallas_call(use_pipeline_modes=False, **kwargs)(*args)
    return out[:B]


def _reference(q, v, mask, weight, bias):
    """Pure-JAX reference matching the PyTorch forward."""
    k = jnp.tanh(jnp.einsum("bsd,od->bso", v, weight) + bias)   # [B, S, D]
    logits = jnp.einsum("bsd,bd->bs", k, q)                     # [B, S]
    logits = jnp.where(mask == 0, -jnp.inf, logits)
    attn = jax.nn.softmax(logits, axis=-1)                      # [B, S]
    return jnp.einsum("bs,bsd->bd", attn, v)                    # [B, D]


if __name__ == "__main__":
    B, S, D = 2, 8, 32
    key = jax.random.PRNGKey(0)
    kq, kv, km, kw, kb = jax.random.split(key, 5)

    q = jax.random.normal(kq, (B, D), dtype=jnp.float32)
    v = jax.random.normal(kv, (B, S, D), dtype=jnp.float32)
    # mask: ints in {0, 1}; ensure at least one valid position per row.
    mask = jnp.concatenate(
        [jnp.ones((B, 1), jnp.int32),
         (jax.random.uniform(km, (B, S - 1)) > 0.3).astype(jnp.int32)],
        axis=1,
    )

    # Deterministic nn.Linear(D, D) params (torch-style: W [out, in], b [out]).
    bound = 1.0 / np.sqrt(D)
    weight = jax.random.uniform(kw, (D, D), minval=-bound, maxval=bound,
                                dtype=jnp.float32)
    bias = jax.random.uniform(kb, (D,), minval=-bound, maxval=bound,
                              dtype=jnp.float32)

    out = jax.block_until_ready(attentive_aggregation(q, v, mask, weight, bias))
    ref = _reference(q, v, mask, weight, bias)
    assert out.shape == (B, D)
    err = float(np.abs(np.asarray(out) - np.asarray(ref)).max())
    assert np.allclose(np.asarray(out), np.asarray(ref), rtol=1e-2, atol=1e-2), err

    # Second config exercises the multi-chunk online-softmax path + padding.
    B2, S2 = 4, 200
    k2q, k2v, k2m = jax.random.split(jax.random.PRNGKey(1), 3)
    q2 = jax.random.normal(k2q, (B2, D), dtype=jnp.float32)
    v2 = jax.random.normal(k2v, (B2, S2, D), dtype=jnp.float32)
    mask2 = jnp.concatenate(
        [jnp.ones((B2, 1), jnp.int32),
         (jax.random.uniform(k2m, (B2, S2 - 1)) > 0.3).astype(jnp.int32)],
        axis=1,
    )
    out2 = jax.block_until_ready(
        attentive_aggregation(q2, v2, mask2, weight, bias, chunk_s=128))
    ref2 = _reference(q2, v2, mask2, weight, bias)
    err2 = float(np.abs(np.asarray(out2) - np.asarray(ref2)).max())
    assert np.allclose(np.asarray(out2), np.asarray(ref2), rtol=1e-2, atol=1e-2), err2

    print("KERNEL_OK")
</pallas_src>

<mosaic_0001>
module attributes {stable_mosaic.version = 11 : i64} {
  func.func @_attentive_agg_kernel(%arg0: i32, %arg1: i32, %arg2: memref<2x32xf32, #tpu.memory_space<vmem>>, %arg3: memref<2x8x32xf32, #tpu.memory_space<vmem>>, %arg4: memref<2x8xi32, #tpu.memory_space<vmem>>, %arg5: memref<32x32xf32, #tpu.memory_space<vmem>>, %arg6: memref<1x32xf32, #tpu.memory_space<vmem>>, %arg7: memref<2x32xf32, #tpu.memory_space<vmem>>, %arg8: memref<2x1xf32, #tpu.memory_space<vmem>>, %arg9: memref<2x1xf32, #tpu.memory_space<vmem>>, %arg10: memref<2x32xf32, #tpu.memory_space<vmem>>) attributes {dimension_semantics = [#tpu.dimension_semantics<parallel>, #tpu.dimension_semantics<arbitrary>], iteration_bounds = array<i64: 1, 1>, scalar_prefetch = 0 : i64, scratch_operands = 3 : i64, tpu.core_type = #tpu.core_type<tc>, window_params = [{transform_indices = @transform_0, window_bounds = array<i64: 2, 32>}, {transform_indices = @transform_1, window_bounds = array<i64: 2, 8, 32>}, {transform_indices = @transform_2, window_bounds = array<i64: 2, 8>}, {pipeline_mode = #tpu.pipeline_mode<synchronous>, transform_indices = @transform_3, window_bounds = array<i64: 32, 32>}, {pipeline_mode = #tpu.pipeline_mode<synchronous>, transform_indices = @transform_4, window_bounds = array<i64: 1, 32>}, {transform_indices = @transform_5, window_bounds = array<i64: 2, 32>}]} {
    %c0_i32 = arith.constant 0 : i32
    %0 = arith.cmpi eq, %arg1, %c0_i32 : i32
    %1 = arith.extui %0 : i1 to i32
    %c0_i32_0 = arith.constant 0 : i32
    %2 = arith.cmpi ne, %1, %c0_i32_0 : i32
    scf.if %2 {
      %cst_31 = arith.constant -1.000000e+30 : f32
      %50 = vector.broadcast %cst_31 : f32 to vector<2x1xf32>
      %c0_32 = arith.constant 0 : index
      %c0_33 = arith.constant 0 : index
      %51 = vector.load %arg8[%c0_32, %c0_33] : memref<2x1xf32, #tpu.memory_space<vmem>>, vector<2x1xf32>
      tpu.vector_store %arg8[%c0_32, %c0_33], %50 {strides = array<i32>} : memref<2x1xf32, #tpu.memory_space<vmem>>, vector<2x1xf32>,
      %cst_34 = arith.constant 0.000000e+00 : f32
      %52 = vector.broadcast %cst_34 : f32 to vector<2x1xf32>
      %c0_35 = arith.constant 0 : index
      %c0_36 = arith.constant 0 : index
      %53 = vector.load %arg9[%c0_35, %c0_36] : memref<2x1xf32, #tpu.memory_space<vmem>>, vector<2x1xf32>
      tpu.vector_store %arg9[%c0_35, %c0_36], %52 {strides = array<i32>} : memref<2x1xf32, #tpu.memory_space<vmem>>, vector<2x1xf32>,
      %cst_37 = arith.constant 0.000000e+00 : f32
      %54 = vector.broadcast %cst_37 : f32 to vector<2x32xf32>
      %c0_38 = arith.constant 0 : index
      %c0_39 = arith.constant 0 : index
      %55 = vector.load %arg10[%c0_38, %c0_39] : memref<2x32xf32, #tpu.memory_space<vmem>>, vector<2x32xf32>
      tpu.vector_store %arg10[%c0_38, %c0_39], %54 {strides = array<i32>} : memref<2x32xf32, #tpu.memory_space<vmem>>, vector<2x32xf32>,
    } else {
    }
    %c0 = arith.constant 0 : index
    %c0_1 = arith.constant 0 : index
    %c0_2 = arith.constant 0 : index
    %3 = vector.load %arg3[%c0, %c0_1, %c0_2] : memref<2x8x32xf32, #tpu.memory_space<vmem>>, vector<2x8x32xf32>
    %c0_3 = arith.constant 0 : index
    %c0_4 = arith.constant 0 : index
    %4 = vector.load %arg2[%c0_3, %c0_4] : memref<2x32xf32, #tpu.memory_space<vmem>>, vector<2x32xf32>
    %c0_5 = arith.constant 0 : index
    %c0_6 = arith.constant 0 : index
    %5 = vector.load %arg5[%c0_5, %c0_6] : memref<32x32xf32, #tpu.memory_space<vmem>>, vector<32x32xf32>
    %c0_7 = arith.constant 0 : index
    %c0_8 = arith.constant 0 : index
    %6 = vector.load %arg6[%c0_7, %c0_8] : memref<1x32xf32, #tpu.memory_space<vmem>>, vector<1x32xf32>
    %7 = vector.shape_cast %3 : vector<2x8x32xf32> to vector<16x32xf32>
    %cst = arith.constant dense<0.000000e+00> : vector<16x32xf32>
    %8 = tpu.matmul %7, %5, %cst {dimension_numbers = #tpu.dot_dimension_numbers<[1], [0], [0], [1], [0, 0, 1, 1], [], []>} : vector<16x32xf32>, vector<32x32xf32>, vector<16x32xf32> -> vector<16x32xf32>
    %9 = vector.broadcast %6 : vector<1x32xf32> to vector<16x32xf32>
    %10 = arith.addf %8, %9 : vector<16x32xf32>
    %11 = math.tanh %10 : vector<16x32xf32>
    %12 = vector.shape_cast %11 : vector<16x32xf32> to vector<2x8x32xf32>
    %13 = vector.shape_cast %4 : vector<2x32xf32> to vector<2x1x32xf32>
    %14 = vector.broadcast %13 : vector<2x1x32xf32> to vector<2x8x32xf32>
    %15 = arith.mulf %12, %14 : vector<2x8x32xf32>
    %cst_9 = arith.constant dense<0.000000e+00> : vector<2x8xf32>
    %16 = vector.multi_reduction <add>, %15, %cst_9 [2] : vector<2x8x32xf32> to vector<2x8xf32>
    %c0_10 = arith.constant 0 : index
    %c0_11 = arith.constant 0 : index
    %17 = vector.load %arg4[%c0_10, %c0_11] : memref<2x8xi32, #tpu.memory_space<vmem>>, vector<2x8xi32>
    %c0_i32_12 = arith.constant 0 : i32
    %18 = vector.broadcast %c0_i32_12 : i32 to vector<2x8xi32>
    %19 = arith.cmpi eq, %17, %18 : vector<2x8xi32>
    %cst_13 = arith.constant -1.000000e+30 : f32
    %20 = vector.broadcast %cst_13 : f32 to vector<2x8xf32>
    %21 = arith.select %19, %20, %16 : vector<2x8xi1>, vector<2x8xf32>
    %c0_14 = arith.constant 0 : index
    %c0_15 = arith.constant 0 : index
    %22 = vector.load %arg8[%c0_14, %c0_15] : memref<2x1xf32, #tpu.memory_space<vmem>>, vector<2x1xf32>
    %cst_16 = arith.constant dense<0xFF800000> : vector<2xf32>
    %23 = vector.multi_reduction <maximumf>, %21, %cst_16 [1] : vector<2x8xf32> to vector<2xf32>
    %24 = vector.shape_cast %23 : vector<2xf32> to vector<2x1xf32>
    %25 = arith.maximumf %22, %24 : vector<2x1xf32>
    %26 = arith.subf %22, %25 : vector<2x1xf32>
    %27 = math.exp %26 : vector<2x1xf32>
    %28 = vector.broadcast %25 : vector<2x1xf32> to vector<2x8xf32>
    %29 = arith.subf %21, %28 : vector<2x8xf32>
    %30 = math.exp %29 : vector<2x8xf32>
    %c0_17 = arith.constant 0 : index
    %c0_18 = arith.constant 0 : index
    %31 = vector.load %arg9[%c0_17, %c0_18] : memref<2x1xf32, #tpu.memory_space<vmem>>, vector<2x1xf32>
    %32 = arith.mulf %27, %31 : vector<2x1xf32>
    %cst_19 = arith.constant dense<0.000000e+00> : vector<2xf32>
    %33 = vector.multi_reduction <add>, %30, %cst_19 [1] : vector<2x8xf32> to vector<2xf32>
    %34 = vector.shape_cast %33 : vector<2xf32> to vector<2x1xf32>
    %35 = arith.addf %32, %34 : vector<2x1xf32>
    %c0_20 = arith.constant 0 : index
    %c0_21 = arith.constant 0 : index
    %36 = vector.load %arg9[%c0_20, %c0_21] : memref<2x1xf32, #tpu.memory_space<vmem>>, vector<2x1xf32>
    tpu.vector_store %arg9[%c0_20, %c0_21], %35 {strides = array<i32>} : memref<2x1xf32, #tpu.memory_space<vmem>>, vector<2x1xf32>,
    %c0_22 = arith.constant 0 : index
    %c0_23 = arith.constant 0 : index
    %37 = vector.load %arg10[%c0_22, %c0_23] : memref<2x32xf32, #tpu.memory_space<vmem>>, vector<2x32xf32>
    %38 = vector.broadcast %27 : vector<2x1xf32> to vector<2x32xf32>
    %39 = arith.mulf %38, %37 : vector<2x32xf32>
    %40 = vector.shape_cast %30 : vector<2x8xf32> to vector<2x8x1xf32>
    %41 = vector.broadcast %40 : vector<2x8x1xf32> to vector<2x8x32xf32>
    %42 = arith.mulf %41, %3 : vector<2x8x32xf32>
    %cst_24 = arith.constant dense<0.000000e+00> : vector<2x32xf32>
    %43 = vector.multi_reduction <add>, %42, %cst_24 [1] : vector<2x8x32xf32> to vector<2x32xf32>
    %44 = arith.addf %39, %43 : vector<2x32xf32>
    %c0_25 = arith.constant 0 : index
    %c0_26 = arith.constant 0 : index
    %45 = vector.load %arg10[%c0_25, %c0_26] : memref<2x32xf32, #tpu.memory_space<vmem>>, vector<2x32xf32>
    tpu.vector_store %arg10[%c0_25, %c0_26], %44 {strides = array<i32>} : memref<2x32xf32, #tpu.memory_space<vmem>>, vector<2x32xf32>,
    %c0_27 = arith.constant 0 : index
    %c0_28 = arith.constant 0 : index
    %46 = vector.load %arg8[%c0_27, %c0_28] : memref<2x1xf32, #tpu.memory_space<vmem>>, vector<2x1xf32>
    tpu.vector_store %arg8[%c0_27, %c0_28], %25 {strides = array<i32>} : memref<2x1xf32, #tpu.memory_space<vmem>>, vector<2x1xf32>,
    %c0_i32_29 = arith.constant 0 : i32
    %47 = arith.cmpi eq, %arg1, %c0_i32_29 : i32
    %48 = arith.extui %47 : i1 to i32
    %c0_i32_30 = arith.constant 0 : i32
    %49 = arith.cmpi ne, %48, %c0_i32_30 : i32
    scf.if %49 {
      %c0_31 = arith.constant 0 : index
      %c0_32 = arith.constant 0 : index
      %50 = vector.load %arg10[%c0_31, %c0_32] : memref<2x32xf32, #tpu.memory_space<vmem>>, vector<2x32xf32>
      %c0_33 = arith.constant 0 : index
      %c0_34 = arith.constant 0 : index
      %51 = vector.load %arg9[%c0_33, %c0_34] : memref<2x1xf32, #tpu.memory_space<vmem>>, vector<2x1xf32>
      %52 = tpu.reciprocal %51 {approx = true} : vector<2x1xf32> -> vector<2x1xf32>
      %53 = vector.broadcast %52 : vector<2x1xf32> to vector<2x32xf32>
      %54 = arith.mulf %50, %53 : vector<2x32xf32>
      %c0_35 = arith.constant 0 : index
      %c0_36 = arith.constant 0 : index
      %55 = vector.load %arg7[%c0_35, %c0_36] : memref<2x32xf32, #tpu.memory_space<vmem>>, vector<2x32xf32>
      tpu.vector_store %arg7[%c0_35, %c0_36], %54 {strides = array<i32>} : memref<2x32xf32, #tpu.memory_space<vmem>>, vector<2x32xf32>,
    } else {
    }
    return
  }
  func.func @transform_0(%arg0: i32, %arg1: i32) -> (i32, i32) {
    %c0_i32 = arith.constant 0 : i32
    %c0_i32_0 = arith.constant 0 : i32
    return %arg0, %c0_i32 : i32, i32
  }
  func.func @transform_1(%arg0: i32, %arg1: i32) -> (i32, i32, i32) {
    %c0_i32 = arith.constant 0 : i32
    %c0_i32_0 = arith.constant 0 : i32
    return %arg0, %arg1, %c0_i32 : i32, i32, i32
  }
  func.func @transform_2(%arg0: i32, %arg1: i32) -> (i32, i32) {
    %c0_i32 = arith.constant 0 : i32
    return %arg0, %arg1 : i32, i32
  }
  func.func @transform_3(%arg0: i32, %arg1: i32) -> (i32, i32) {
    %c0_i32 = arith.constant 0 : i32
    %c0_i32_0 = arith.constant 0 : i32
    %c0_i32_1 = arith.constant 0 : i32
    return %c0_i32, %c0_i32_0 : i32, i32
  }
  func.func @transform_4(%arg0: i32, %arg1: i32) -> (i32, i32) {
    %c0_i32 = arith.constant 0 : i32
    %c0_i32_0 = arith.constant 0 : i32
    %c0_i32_1 = arith.constant 0 : i32
    return %c0_i32, %c0_i32_0 : i32, i32
  }
  func.func @transform_5(%arg0: i32, %arg1: i32) -> (i32, i32) {
    %c0_i32 = arith.constant 0 : i32
    %c0_i32_0 = arith.constant 0 : i32
    return %arg0, %c0_i32 : i32, i32
  }
}

module attributes {stable_mosaic.version = 11 : i64} {
  func.func @_attentive_agg_kernel(%arg0: i32, %arg1: i32, %arg2: memref<2x32xf32, #tpu.memory_space<vmem>>, %arg3: memref<2x8x32xf32, #tpu.memory_space<vmem>>, %arg4: memref<2x8xi32, #tpu.memory_space<vmem>>, %arg5: memref<32x32xf32, #tpu.memory_space<vmem>>, %arg6: memref<1x32xf32, #tpu.memory_space<vmem>>, %arg7: memref<2x32xf32, #tpu.memory_space<vmem>>, %arg8: memref<2x1xf32, #tpu.memory_space<vmem>>, %arg9: memref<2x1xf32, #tpu.memory_space<vmem>>, %arg10: memref<2x32xf32, #tpu.memory_space<vmem>>) attributes {dimension_semantics = [#tpu.dimension_semantics<parallel>, #tpu.dimension_semantics<arbitrary>], iteration_bounds = array<i64: 1, 1>, scalar_prefetch = 0 : i64, scratch_operands = 3 : i64, tpu.core_type = #tpu.core_type<tc>, window_params = [{transform_indices = @transform_0, window_bounds = array<i64: 2, 32>}, {transform_indices = @transform_1, window_bounds = array<i64: 2, 8, 32>}, {transform_indices = @transform_2, window_bounds = array<i64: 2, 8>}, {pipeline_mode = #tpu.pipeline_mode<synchronous>, transform_indices = @transform_3, window_bounds = array<i64: 32, 32>}, {pipeline_mode = #tpu.pipeline_mode<synchronous>, transform_indices = @transform_4, window_bounds = array<i64: 1, 32>}, {transform_indices = @transform_5, window_bounds = array<i64: 2, 32>}]} {
    %c0_i32 = arith.constant 0 : i32
    %0 = arith.cmpi eq, %arg1, %c0_i32 : i32
    %1 = arith.extui %0 : i1 to i32
    %c0_i32_0 = arith.constant 0 : i32
    %2 = arith.cmpi ne, %1, %c0_i32_0 : i32
    scf.if %2 {
      %cst_31 = arith.constant -1.000000e+30 : f32
      %50 = vector.broadcast %cst_31 : f32 to vector<2x1xf32>
      %c0_32 = arith.constant 0 : index
      %c0_33 = arith.constant 0 : index
      %51 = vector.load %arg8[%c0_32, %c0_33] : memref<2x1xf32, #tpu.memory_space<vmem>>, vector<2x1xf32>
      tpu.vector_store %arg8[%c0_32, %c0_33], %50 {strides = array<i32>} : memref<2x1xf32, #tpu.memory_space<vmem>>, vector<2x1xf32>,
      %cst_34 = arith.constant 0.000000e+00 : f32
      %52 = vector.broadcast %cst_34 : f32 to vector<2x1xf32>
      %c0_35 = arith.constant 0 : index
      %c0_36 = arith.constant 0 : index
      %53 = vector.load %arg9[%c0_35, %c0_36] : memref<2x1xf32, #tpu.memory_space<vmem>>, vector<2x1xf32>
      tpu.vector_store %arg9[%c0_35, %c0_36], %52 {strides = array<i32>} : memref<2x1xf32, #tpu.memory_space<vmem>>, vector<2x1xf32>,
      %cst_37 = arith.constant 0.000000e+00 : f32
      %54 = vector.broadcast %cst_37 : f32 to vector<2x32xf32>
      %c0_38 = arith.constant 0 : index
      %c0_39 = arith.constant 0 : index
      %55 = vector.load %arg10[%c0_38, %c0_39] : memref<2x32xf32, #tpu.memory_space<vmem>>, vector<2x32xf32>
      tpu.vector_store %arg10[%c0_38, %c0_39], %54 {strides = array<i32>} : memref<2x32xf32, #tpu.memory_space<vmem>>, vector<2x32xf32>,
    } else {
    }
    %c0 = arith.constant 0 : index
    %c0_1 = arith.constant 0 : index
    %c0_2 = arith.constant 0 : index
    %3 = vector.load %arg3[%c0, %c0_1, %c0_2] : memref<2x8x32xf32, #tpu.memory_space<vmem>>, vector<2x8x32xf32>
    %c0_3 = arith.constant 0 : index
    %c0_4 = arith.constant 0 : index
    %4 = vector.load %arg2[%c0_3, %c0_4] : memref<2x32xf32, #tpu.memory_space<vmem>>, vector<2x32xf32>
    %c0_5 = arith.constant 0 : index
    %c0_6 = arith.constant 0 : index
    %5 = vector.load %arg5[%c0_5, %c0_6] : memref<32x32xf32, #tpu.memory_space<vmem>>, vector<32x32xf32>
    %c0_7 = arith.constant 0 : index
    %c0_8 = arith.constant 0 : index
    %6 = vector.load %arg6[%c0_7, %c0_8] : memref<1x32xf32, #tpu.memory_space<vmem>>, vector<1x32xf32>
    %7 = vector.shape_cast %3 : vector<2x8x32xf32> to vector<16x32xf32>
    %cst = arith.constant dense<0.000000e+00> : vector<16x32xf32>
    %8 = tpu.matmul %7, %5, %cst {dimension_numbers = #tpu.dot_dimension_numbers<[1], [0], [0], [1], [0, 0, 1, 1], [], []>} : vector<16x32xf32>, vector<32x32xf32>, vector<16x32xf32> -> vector<16x32xf32>
    %9 = vector.broadcast %6 : vector<1x32xf32> to vector<16x32xf32>
    %10 = arith.addf %8, %9 : vector<16x32xf32>
    %11 = math.tanh %10 : vector<16x32xf32>
    %12 = vector.shape_cast %11 : vector<16x32xf32> to vector<2x8x32xf32>
    %13 = vector.shape_cast %4 : vector<2x32xf32> to vector<2x1x32xf32>
    %14 = vector.broadcast %13 : vector<2x1x32xf32> to vector<2x8x32xf32>
    %15 = arith.mulf %12, %14 : vector<2x8x32xf32>
    %cst_9 = arith.constant dense<0.000000e+00> : vector<2x8xf32>
    %16 = vector.multi_reduction <add>, %15, %cst_9 [2] : vector<2x8x32xf32> to vector<2x8xf32>
    %c0_10 = arith.constant 0 : index
    %c0_11 = arith.constant 0 : index
    %17 = vector.load %arg4[%c0_10, %c0_11] : memref<2x8xi32, #tpu.memory_space<vmem>>, vector<2x8xi32>
    %c0_i32_12 = arith.constant 0 : i32
    %18 = vector.broadcast %c0_i32_12 : i32 to vector<2x8xi32>
    %19 = arith.cmpi eq, %17, %18 : vector<2x8xi32>
    %cst_13 = arith.constant -1.000000e+30 : f32
    %20 = vector.broadcast %cst_13 : f32 to vector<2x8xf32>
    %21 = arith.select %19, %20, %16 : vector<2x8xi1>, vector<2x8xf32>
    %c0_14 = arith.constant 0 : index
    %c0_15 = arith.constant 0 : index
    %22 = vector.load %arg8[%c0_14, %c0_15] : memref<2x1xf32, #tpu.memory_space<vmem>>, vector<2x1xf32>
    %cst_16 = arith.constant dense<0xFF800000> : vector<2xf32>
    %23 = vector.multi_reduction <maximumf>, %21, %cst_16 [1] : vector<2x8xf32> to vector<2xf32>
    %24 = vector.shape_cast %23 : vector<2xf32> to vector<2x1xf32>
    %25 = arith.maximumf %22, %24 : vector<2x1xf32>
    %26 = arith.subf %22, %25 : vector<2x1xf32>
    %27 = math.exp %26 : vector<2x1xf32>
    %28 = vector.broadcast %25 : vector<2x1xf32> to vector<2x8xf32>
    %29 = arith.subf %21, %28 : vector<2x8xf32>
    %30 = math.exp %29 : vector<2x8xf32>
    %c0_17 = arith.constant 0 : index
    %c0_18 = arith.constant 0 : index
    %31 = vector.load %arg9[%c0_17, %c0_18] : memref<2x1xf32, #tpu.memory_space<vmem>>, vector<2x1xf32>
    %32 = arith.mulf %27, %31 : vector<2x1xf32>
    %cst_19 = arith.constant dense<0.000000e+00> : vector<2xf32>
    %33 = vector.multi_reduction <add>, %30, %cst_19 [1] : vector<2x8xf32> to vector<2xf32>
    %34 = vector.shape_cast %33 : vector<2xf32> to vector<2x1xf32>
    %35 = arith.addf %32, %34 : vector<2x1xf32>
    %c0_20 = arith.constant 0 : index
    %c0_21 = arith.constant 0 : index
    %36 = vector.load %arg9[%c0_20, %c0_21] : memref<2x1xf32, #tpu.memory_space<vmem>>, vector<2x1xf32>
    tpu.vector_store %arg9[%c0_20, %c0_21], %35 {strides = array<i32>} : memref<2x1xf32, #tpu.memory_space<vmem>>, vector<2x1xf32>,
    %c0_22 = arith.constant 0 : index
    %c0_23 = arith.constant 0 : index
    %37 = vector.load %arg10[%c0_22, %c0_23] : memref<2x32xf32, #tpu.memory_space<vmem>>, vector<2x32xf32>
    %38 = vector.broadcast %27 : vector<2x1xf32> to vector<2x32xf32>
    %39 = arith.mulf %38, %37 : vector<2x32xf32>
    %40 = vector.shape_cast %30 : vector<2x8xf32> to vector<2x8x1xf32>
    %41 = vector.broadcast %40 : vector<2x8x1xf32> to vector<2x8x32xf32>
    %42 = arith.mulf %41, %3 : vector<2x8x32xf32>
    %cst_24 = arith.constant dense<0.000000e+00> : vector<2x32xf32>
    %43 = vector.multi_reduction <add>, %42, %cst_24 [1] : vector<2x8x32xf32> to vector<2x32xf32>
    %44 = arith.addf %39, %43 : vector<2x32xf32>
    %c0_25 = arith.constant 0 : index
    %c0_26 = arith.constant 0 : index
    %45 = vector.load %arg10[%c0_25, %c0_26] : memref<2x32xf32, #tpu.memory_space<vmem>>, vector<2x32xf32>
    tpu.vector_store %arg10[%c0_25, %c0_26], %44 {strides = array<i32>} : memref<2x32xf32, #tpu.memory_space<vmem>>, vector<2x32xf32>,
    %c0_27 = arith.constant 0 : index
    %c0_28 = arith.constant 0 : index
    %46 = vector.load %arg8[%c0_27, %c0_28] : memref<2x1xf32, #tpu.memory_space<vmem>>, vector<2x1xf32>
    tpu.vector_store %arg8[%c0_27, %c0_28], %25 {strides = array<i32>} : memref<2x1xf32, #tpu.memory_space<vmem>>, vector<2x1xf32>,
    %c0_i32_29 = arith.constant 0 : i32
    %47 = arith.cmpi eq, %arg1, %c0_i32_29 : i32
    %48 = arith.extui %47 : i1 to i32
    %c0_i32_30 = arith.constant 0 : i32
    %49 = arith.cmpi ne, %48, %c0_i32_30 : i32
    scf.if %49 {
      %c0_31 = arith.constant 0 : index
      %c0_32 = arith.constant 0 : index
      %50 = vector.load %arg10[%c0_31, %c0_32] : memref<2x32xf32, #tpu.memory_space<vmem>>, vector<2x32xf32>
      %c0_33 = arith.constant 0 : index
      %c0_34 = arith.constant 0 : index
      %51 = vector.load %arg9[%c0_33, %c0_34] : memref<2x1xf32, #tpu.memory_space<vmem>>, vector<2x1xf32>
      %52 = tpu.reciprocal %51 {approx = true} : vector<2x1xf32> -> vector<2x1xf32>
      %53 = vector.broadcast %52 : vector<2x1xf32> to vector<2x32xf32>
      %54 = arith.mulf %50, %53 : vector<2x32xf32>
      %c0_35 = arith.constant 0 : index
      %c0_36 = arith.constant 0 : index
      %55 = vector.load %arg7[%c0_35, %c0_36] : memref<2x32xf32, #tpu.memory_space<vmem>>, vector<2x32xf32>
      tpu.vector_store %arg7[%c0_35, %c0_36], %54 {strides = array<i32>} : memref<2x32xf32, #tpu.memory_space<vmem>>, vector<2x32xf32>,
    } else {
    }
    return
  }
  func.func @transform_0(%arg0: i32, %arg1: i32) -> (i32, i32) {
    %c0_i32 = arith.constant 0 : i32
    %c0_i32_0 = arith.constant 0 : i32
    return %arg0, %c0_i32 : i32, i32
  }
  func.func @transform_1(%arg0: i32, %arg1: i32) -> (i32, i32, i32) {
    %c0_i32 = arith.constant 0 : i32
    %c0_i32_0 = arith.constant 0 : i32
    return %arg0, %arg1, %c0_i32 : i32, i32, i32
  }
  func.func @transform_2(%arg0: i32, %arg1: i32) -> (i32, i32) {
    %c0_i32 = arith.constant 0 : i32
    return %arg0, %arg1 : i32, i32
  }
  func.func @transform_3(%arg0: i32, %arg1: i32) -> (i32, i32) {
    %c0_i32 = arith.constant 0 : i32
    %c0_i32_0 = arith.constant 0 : i32
    %c0_i32_1 = arith.constant 0 : i32
    return %c0_i32, %c0_i32_0 : i32, i32
  }
  func.func @transform_4(%arg0: i32, %arg1: i32) -> (i32, i32) {
    %c0_i32 = arith.constant 0 : i32
    %c0_i32_0 = arith.constant 0 : i32
    %c0_i32_1 = arith.constant 0 : i32
    return %c0_i32, %c0_i32_0 : i32, i32
  }
  func.func @transform_5(%arg0: i32, %arg1: i32) -> (i32, i32) {
    %c0_i32 = arith.constant 0 : i32
    %c0_i32_0 = arith.constant 0 : i32
    return %arg0, %c0_i32 : i32, i32
  }
}

</mosaic_0001>

<llo_original>
// kernel: tpu_custom_call.1
$region0: #{tpu_custom_call.1}
  #allocation0 [shape = 'u32[]', space=smem, size = 0x4, offset = 0x4, fixed_abs, tag = 'smem constant byte address 0x4 - core index']
  #allocation1 [shape = 'u32[144,128]{1,0:T(1,128)}', space=vmem, size = 0x12000, scoped, tag = 'internal scratch']
  #allocation2 [shape = 'f32[2,1]{1,0:T(2,128)}', space=vmem, size = 0x400, scoped, tag = 'scratch operand']
  #allocation3 [shape = 'f32[2,1]{1,0:T(2,128)}', space=vmem, size = 0x400, scoped, tag = 'scratch operand']
  #allocation4 [shape = 'f32[2,32]{1,0:T(2,128)}', space=vmem, size = 0x400, scoped, tag = 'scratch operand']
  %s0 = inlined_call_operand.hbm [shape: f32[2,32], index: 0, kind: input, shape index: {}]
  %s1 = inlined_call_operand.hbm [shape: f32[2,8,32], index: 1, kind: input, shape index: {}]
  %s2 = inlined_call_operand.vmem [shape: s32[2,8], index: 2, kind: input, shape index: {}]
  %s3 = inlined_call_operand.hbm [shape: f32[32,32], index: 3, kind: input, shape index: {}]
  %s4 = inlined_call_operand.vmem [shape: f32[1,32], index: 4, kind: input, shape index: {}]
  %s5 = inlined_call_operand.hbm [shape: f32[2,32], index: 5, kind: output, shape index: {}]
  %s6 = sld [smem:[#allocation0]]
  $region50: #{tpu_custom_call.1} parent=0
    _
  %s8 = ssub.s32 1, %s6
  %s9 = scalar_select 0, %s8, %s6
  $region1: #{tpu_custom_call.1} parent=0
    #allocation5 [shape = 'u8[1024]{0}', space=vmem, size = 0x400, scoped, tag = 'input window, operand 0, single buffered']
    #allocation6 [shape = 's32[1]{0}', space=sflag, size = 0x4, scoped, tag = 'scoped memory for tpu_custom_call.1']
    #allocation7 [shape = 's32[1]{0}', space=sflag, size = 0x4, scoped, tag = 'scoped memory for tpu_custom_call.1']
    #allocation8 [shape = 'u8[8192]{0}', space=vmem, size = 0x2000, scoped, tag = 'input window, operand 1, single buffered']
    #allocation9 [shape = 's32[1]{0}', space=sflag, size = 0x4, scoped, tag = 'scoped memory for tpu_custom_call.1']
    #allocation10 [shape = 'u8[16384]{0}', space=vmem, size = 0x4000, scoped, tag = 'input window, operand 3, single buffered']
    #allocation11 [shape = 'u8[1024]{0}', space=vmem, size = 0x400, scoped, tag = 'output window, operand 0, single buffered']
    %10 = vsyncpa [#allocation6], 0
    %11 = vsyncpa [#allocation9], 0
    %12 = vsyncpa [#allocation7], 0
    // Predicated region
    $region2: #{tpu_custom_call.1} parent=1 // pred_check
      _
    $region3: #{tpu_custom_call.1} parent=1 // pred_check_branch
      %14 = sbr.rel (0) target = $region5
    $region4: #{tpu_custom_call.1} parent=1 // pred_region
      %s16 = ssub.s32 32, 32
      %17 = vsyncadd [#allocation6], %s16
      %s19 = sshll.u32 [#allocation5], 4
      %s20 = int_to_ptr.vmem [resolvable:$true] %s19
      %22 = dma.hbm_to_vmem [thread:$0]  %s0, 32, %s20, [#allocation6]
    $region5: #{tpu_custom_call.1} parent=1 // pred_fallthru
      _
    // Predicated region
    $region6: #{tpu_custom_call.1} parent=1 // pred_check
      _
    $region7: #{tpu_custom_call.1} parent=1 // pred_check_branch
      %24 = sbr.rel (0) target = $region9
    $region8: #{tpu_custom_call.1} parent=1 // pred_region
      %s26 = ssub.s32 256, 256
      %27 = vsyncadd [#allocation9], %s26
      %s28 = sshll.u32 [#allocation8], 4
      %s29 = int_to_ptr.vmem [resolvable:$true] %s28
      %34 = dma.hbm_to_vmem [thread:$0]  %s1, 256, %s29, [#allocation9], 128, 128, 8
    $region9: #{tpu_custom_call.1} parent=1 // pred_fallthru
      _
    // Predicated region
    $region10: #{tpu_custom_call.1} parent=1 // pred_check
      _
    $region11: #{tpu_custom_call.1} parent=1 // pred_check_branch
      %36 = sbr.rel (0) target = $region13
    $region12: #{tpu_custom_call.1} parent=1 // pred_region
      _
    $region13: #{tpu_custom_call.1} parent=1 // pred_fallthru
      _
    // Predicated region
    $region14: #{tpu_custom_call.1} parent=1 // pred_check
      _
    $region15: #{tpu_custom_call.1} parent=1 // pred_check_branch
      %38 = sbr.rel (0) target = $region17
    $region16: #{tpu_custom_call.1} parent=1 // pred_region
      %s40 = ssub.s32 512, 512
      %41 = vsyncadd [#allocation9], %s40
      %s42 = sshll.u32 [#allocation10], 4
      %s43 = int_to_ptr.vmem [resolvable:$true] %s42
      %48 = dma.hbm_to_vmem [thread:$0]  %s3, 512, %s43, [#allocation9], 128, 128, 8
    $region17: #{tpu_custom_call.1} parent=1 // pred_fallthru
      _
    // Predicated region
    $region18: #{tpu_custom_call.1} parent=1 // pred_check
      _
    $region19: #{tpu_custom_call.1} parent=1 // pred_check_branch
      %50 = sbr.rel (0) target = $region21
    $region20: #{tpu_custom_call.1} parent=1 // pred_region
      _
    $region21: #{tpu_custom_call.1} parent=1 // pred_fallthru
      _
    // Predicated region
    $region22: #{tpu_custom_call.1} parent=1 // pred_check
      _
    $region23: #{tpu_custom_call.1} parent=1 // pred_check_branch
      %52 = sbr.rel (0) target = $region25
    $region24: #{tpu_custom_call.1} parent=1 // pred_region
      %53 = dma.done [#allocation6], 32
    $region25: #{tpu_custom_call.1} parent=1 // pred_fallthru
      _
    // Predicated region
    $region26: #{tpu_custom_call.1} parent=1 // pred_check
      _
    $region27: #{tpu_custom_call.1} parent=1 // pred_check_branch
      %55 = sbr.rel (0) target = $region29
    $region28: #{tpu_custom_call.1} parent=1 // pred_region
      %56 = dma.done [#allocation9], 256
    $region29: #{tpu_custom_call.1} parent=1 // pred_fallthru
      _
    // Predicated region
    $region30: #{tpu_custom_call.1} parent=1 // pred_check
      _
    $region31: #{tpu_custom_call.1} parent=1 // pred_check_branch
      %58 = sbr.rel (0) target = $region33
    $region32: #{tpu_custom_call.1} parent=1 // pred_region
      %59 = dma.done [#allocation9], 512
    $region33: #{tpu_custom_call.1} parent=1 // pred_fallthru
      _
    %p60 = scmp.eq.s32.totalorder 0, 0
    // Predicated region
    $region34: #{tpu_custom_call.1} parent=1 // pred_check
      %p61 = pneg %p60
    $region35: #{tpu_custom_call.1} parent=1 // pred_check_branch
      %63 = sbr.rel (%p61) target = $region37
    $region36: #{tpu_custom_call.1} parent=1 // pred_region
      %vm64 = vcmask 1024
      %65 = vst.msk [vmem:[#allocation2] sm:$0x3] %vm64, -1e+30
      %66 = vst.msk [vmem:[#allocation3] sm:$0x3] %vm64, 0.0
      %vm67 = vcmask 254976
      %68 = vst.msk [vmem:[#allocation4] sm:$0x3] %vm67, 0.0
    $region37: #{tpu_custom_call.1} parent=1 // pred_fallthru
      _
    %v69 = vld [vmem:[#allocation8] sm:$0xff]
    %v70 = vld [vmem:[#allocation8 + $0x8] sm:$0xff]
    %v71 = vld [vmem:[#allocation5] sm:$0x3]
    %v72 = vld [vmem:[#allocation10] sm:$0xff]
    %v73 = vld [vmem:[#allocation10 + $0x8] sm:$0xff]
    %v74 = vld [vmem:[#allocation10 + $0x10] sm:$0xff]
    %v75 = vld [vmem:[#allocation10 + $0x18] sm:$0xff]
    %v76 = vld [vmem:[%s4] sm:$0x1]
    %v78 = vlaneseq
    %v79 = vshrl.u32 %v78, 7
    %v80 = vsub.s32 0, %v79
    %v81 = vrot.slane %v76, %v80
    %vm83 = vcmask 261120
    %v85 = vsel %vm83, %v69, 0
    %v88 = vsel %vm83, %v70, 0
    %90 = vmatprep.subr.mxu0 0.0
    %91 = vmatpush1.msra.mxu0 %v72
    %92 = vmatprep.subr.mxu0 0.0
    %93 = vmatpush1.msra.mxu0 %v73
    %94 = vmatprep.subr.mxu0 0.0
    %95 = vmatpush1.msra.mxu0 %v74
    %96 = vmatprep.subr.mxu0 0.0
    %97 = vmatpush1.msra.mxu0 %v75
    %98 = vmatprep.subr.mxu0 0.0
    %99 = vmatpush1.msra.mxu0 0.0
    %100 = vmatprep.subr.mxu0 0.0
    %101 = vmatpush1.msra.mxu0 0.0
    %102 = vmatprep.subr.mxu0 0.0
    %103 = vmatpush1.msra.mxu0 0.0
    %104 = vmatprep.subr.mxu0 0.0
    %105 = vmatpush1.msra.mxu0 0.0
    %106 = vmatprep.subr.mxu0 0.0
    %107 = vmatpush1.msra.mxu0 0.0
    %108 = vmatprep.subr.mxu0 0.0
    %109 = vmatpush1.msra.mxu0 0.0
    %110 = vmatprep.subr.mxu0 0.0
    %111 = vmatpush1.msra.mxu0 0.0
    %112 = vmatprep.subr.mxu0 0.0
    %113 = vmatpush1.msra.mxu0 0.0
    %114 = vmatprep.subr.mxu0 0.0
    %115 = vmatpush1.msra.mxu0 0.0
    %116 = vmatprep.subr.mxu0 0.0
    %117 = vmatpush1.msra.mxu0 0.0
    %118 = vmatprep.subr.mxu0 0.0
    %119 = vmatpush1.msra.mxu0 0.0
    %120 = vmatprep.subr.mxu0 0.0
    %121 = vmatpush1.msra.mxu0 0.0
    %122 = vmatprep.subr.mxu0 0.0
    %123 = vmatpush1.msra.mxu0 0.0
    %124 = vmatprep.subr.mxu0 0.0
    %125 = vmatpush1.msra.mxu0 0.0
    %126 = vmatprep.subr.mxu0 0.0
    %127 = vmatpush1.msra.mxu0 0.0
    %128 = vmatprep.subr.mxu0 0.0
    %129 = vmatpush1.msra.mxu0 0.0
    %130 = vmatprep.subr.mxu0 0.0
    %131 = vmatpush1.msra.mxu0 0.0
    %132 = vmatprep.subr.mxu0 0.0
    %133 = vmatpush1.msra.mxu0 0.0
    %134 = vmatprep.subr.mxu0 0.0
    %135 = vmatpush1.msra.mxu0 0.0
    %136 = vmatprep.subr.mxu0 0.0
    %137 = vmatpush1.msra.mxu0 0.0
    %138 = vmatprep.subr.mxu0 0.0
    %139 = vmatpush1.msra.mxu0 0.0
    %140 = vmatprep.subr.mxu0 0.0
    %141 = vmatpush1.msra.mxu0 0.0
    %142 = vmatprep.subr.mxu0 0.0
    %143 = vmatpush1.msra.mxu0 0.0
    %144 = vmatprep.subr.mxu0 0.0
    %145 = vmatpush1.msra.mxu0 0.0
    %146 = vmatprep.subr.mxu0 0.0
    %147 = vmatpush1.msra.mxu0 0.0
    %148 = vmatprep.subr.mxu0 0.0
    %149 = vmatpush1.msra.mxu0 0.0
    %150 = vmatprep.subr.mxu0 0.0
    %151 = vmatpush1.msra.mxu0 0.0
    %152 = vmatprep.subr.mxu0 0.0
    %153 = vmatpush1.msra.mxu0 0.0
    %154 = vmatprep.mubr.f32.mxu0 0.0
    %155 = vmatmul.mubr.f32.gmra.mrb[0].mxu0 %v85
    %v156 = vpop.f32.mrb[0].mxu0
    %v157 = vadd.f32 %v81, %v156
    %v158 = vpop.f32.mrb[0].mxu0
    %159 = vmatprep.mubr.f32.mxu0 0.0
    %160 = vmatmul.mubr.f32.gmra.mrb[0].mxu0 %v88
    %v161 = vpop.f32.mrb[0].mxu0
    %v162 = vadd.f32 %v81, %v161
    %v163 = vpop.f32.mrb[0].mxu0
    %164 = vdwg.mxu0
    %v165 = vtanh.pop %v157
    %v166 = vtanh.pop %v162
    %v169 = vunpack.c.l.s4 1966171168
    %v170 = vunpack.c.0.s8 %v169
    %v171 = vlaneseq
    %v172 = vshrl.u32 %v171, 7
    %v173 = vsub.s32 %v170, %v172
    %v174 = vrot.slane %v71, %v173
    %v175 = vcombine.high %v174, %v174
    %v177 = vunpack.c.l.s4 1966171168
    %v178 = vunpack.c.0.s8 %v177
    %v179 = vlaneseq
    %v180 = vshrl.u32 %v179, 7
    %v181 = vsub.s32 %v178, %v180
    %v182 = vrot.slane %v174, %v181
    %v184 = vunpack.c.l.s4 1966171168
    %v185 = vunpack.c.0.s8 %v184
    %v186 = vlaneseq
    %v187 = vshrl.u32 %v186, 7
    %v188 = vsub.s32 %v185, %v187
    %v189 = vrot.slane %v175, %v188
    %v190 = vlaneseq
    %v191 = vshrl.u32 %v190, 7
    %v192 = vsub.s32 0, %v191
    %v193 = vrot.slane %v182, %v192
    %v194 = vlaneseq
    %v195 = vshrl.u32 %v194, 7
    %v196 = vsub.s32 0, %v195
    %v197 = vrot.slane %v189, %v196
    %v200 = vmul.f32 %v165, %v193
    %v201 = vmul.f32 %v166, %v197
    %v202 = vsel %vm83, %v200, 0.0
    %203 = vadd.xlane.f32.xlu0 %v202
    %v204 = vpop.xlane.xlu0 %203
    %v205 = vsel %vm83, %v201, 0.0
    %206 = vadd.xlane.f32.xlu0 %v205
    %v207 = vpop.xlane.xlu0 %206
    %v208 = vld [vmem:[%s2] sm:$0x3]
    %vm209 = vcmp.eq.s32.totalorder %v208, 0
    %v212 = vlaneseq
    %v213 = vand.u32 %v212, 127
    %v214 = vlaneseq
    %v215 = vshrl.u32 %v214, 7
    %v216 = vsub.s32 %v213, %v215
    %v217 = vrot.slane %v204, %v216
    %v218 = vlaneseq
    %v219 = vshrl.u32 %v218, 7
    %v220 = vsub.s32 %v213, %v219
    %v221 = vrot.slane %v207, %v220
    %vm222 = vcmask 1041409
    %v223 = vsel %vm222, %v221, %v217
    %v225 = vsel %vm209, -1e+30, %v223
    %v226 = vld [vmem:[#allocation2] sm:$0x3]
    %vm227 = vcmask 58368
    %v228 = vsel %vm227, %v225, -inf
    %229 = vmax.xlane.f32.xlu0 %v228
    %v230 = vpop.xlane.xlu0 %229
    %v231 = vmax.f32 %v226, %v230
    %v232 = vsub.f32 %v226, %v231
    %v233 = vmul.f32 %v232, 1.442695
    %v234 = vpow.pop %v233
    %236 = vset.pattern.permute.xlu0 0
    %237 = vperm.xlu0 %236, %v231
    %v238 = vpop.permute.xlu0 %237
    %v240 = vsub.f32 %v225, %v238
    %v241 = vmul.f32 %v240, 1.442695
    %v242 = vpow.pop %v241
    %v243 = vld [vmem:[#allocation3] sm:$0x3]
    %v244 = vmul.f32 %v234, %v243
    %v245 = vsel %vm227, %v242, 0.0
    %246 = vadd.xlane.f32.xlu0 %v245
    %v247 = vpop.xlane.xlu0 %246
    %v248 = vadd.f32 %v244, %v247
    %vm249 = vcmask 1024
    %250 = vst.msk [vmem:[#allocation3] sm:$0x3] %vm249, %v248
    %v251 = vld [vmem:[#allocation4] sm:$0x3]
    %253 = vset.pattern.permute.xlu0 0
    %254 = vperm.xlu0 %253, %v234
    %v255 = vpop.permute.xlu0 %254
    %v257 = vmul.f32 %v255, %v251
    %v258 = vlaneseq
    %v259 = vshrl.u32 %v258, 7
    %v260 = vsub.s32 0, %v259
    %v261 = vrot.slane %v242, %v260
    %263 = vbcast.lane.b32.xlu0 %v261, 256
    %v264 = vpop.permute.xlu0 %263
    %v265 = vlaneseq
    %v266 = vshrl.u32 %v265, 7
    %v267 = vsub.s32 1, %v266
    %v268 = vrot.slane %v242, %v267
    %270 = vbcast.lane.b32.xlu0 %v268, 256
    %v271 = vpop.permute.xlu0 %270
    %v272 = vmul.f32 %v264, %v69
    %v273 = vmul.f32 %v271, %v70
    %v274 = vsel %vm83, %v272, 0.0
    %v275 = vrot.slane %v274, 4
    %v276 = vadd.f32 %v274, %v275
    %v277 = vrot.slane %v276, 2
    %v278 = vadd.f32 %v276, %v277
    %v279 = vrot.slane %v278, 1
    %v280 = vadd.f32 %v278, %v279
    %v281 = vsel %vm83, %v273, 0.0
    %v282 = vrot.slane %v281, 4
    %v283 = vadd.f32 %v281, %v282
    %v284 = vrot.slane %v283, 2
    %v285 = vadd.f32 %v283, %v284
    %v286 = vrot.slane %v285, 1
    %v287 = vadd.f32 %v285, %v286
    %v290 = vsel %vm222, %v287, %v280
    %v292 = vadd.f32 %v257, %v290
    %vm293 = vcmask 254976
    %294 = vst.msk [vmem:[#allocation4] sm:$0x3] %vm293, %v292
    %295 = vst.msk [vmem:[#allocation2] sm:$0x3] %vm249, %v231
    // Predicated region
    $region38: #{tpu_custom_call.1} parent=1 // pred_check
      %p296 = pneg %p60
    $region39: #{tpu_custom_call.1} parent=1 // pred_check_branch
      %298 = sbr.rel (%p296) target = $region41
    $region40: #{tpu_custom_call.1} parent=1 // pred_region
      %v299 = vld [vmem:[#allocation4] sm:$0x3]
      %v300 = vld [vmem:[#allocation3] sm:$0x3]
      %v301 = vrcp.pop %v300
      %303 = vset.pattern.permute.xlu0 0
      %304 = vperm.xlu0 %303, %v301
      %v305 = vpop.permute.xlu0 %304
      %v307 = vmul.f32 %v299, %v305
      %308 = vst.msk [vmem:[#allocation11] sm:$0x3] %vm293, %v307
    $region41: #{tpu_custom_call.1} parent=1 // pred_fallthru
      _
    // Predicated region
    $region42: #{tpu_custom_call.1} parent=1 // pred_check
      _
    $region43: #{tpu_custom_call.1} parent=1 // pred_check_branch
      %310 = sbr.rel (0) target = $region45
    $region44: #{tpu_custom_call.1} parent=1 // pred_region
      %s312 = ssub.s32 32, 32
      %313 = vsyncadd [#allocation7], %s312
      %s315 = sshll.u32 [#allocation11], 4
      %s316 = int_to_ptr.vmem [resolvable:$true] %s315
      %318 = dma.vmem_to_hbm [thread:$0]  %s316, 32, %s5, [#allocation7]
    $region45: #{tpu_custom_call.1} parent=1 // pred_fallthru
      _
    // Predicated region
    $region46: #{tpu_custom_call.1} parent=1 // pred_check
      _
    $region47: #{tpu_custom_call.1} parent=1 // pred_check_branch
      %320 = sbr.rel (0) target = $region49
    $region48: #{tpu_custom_call.1} parent=1 // pred_region
      %321 = dma.done [#allocation7], 32
    $region49: #{tpu_custom_call.1} parent=1 // pred_fallthru
      _
    %322 = vsyncpa [#allocation6], 1
    %323 = vsyncpa [#allocation9], 1
    %324 = vsyncpa [#allocation7], 1

// kernel: tpu_custom_call.1
$region0: #{tpu_custom_call.1}
  #allocation0 [shape = 'u32[]', space=smem, size = 0x4, offset = 0x4, fixed_abs, tag = 'smem constant byte address 0x4 - core index']
  #allocation1 [shape = 'u32[144,128]{1,0:T(1,128)}', space=vmem, size = 0x12000, scoped, tag = 'internal scratch']
  #allocation2 [shape = 'f32[2,1]{1,0:T(2,128)}', space=vmem, size = 0x400, scoped, tag = 'scratch operand']
  #allocation3 [shape = 'f32[2,1]{1,0:T(2,128)}', space=vmem, size = 0x400, scoped, tag = 'scratch operand']
  #allocation4 [shape = 'f32[2,32]{1,0:T(2,128)}', space=vmem, size = 0x400, scoped, tag = 'scratch operand']
  %s0 = inlined_call_operand.hbm [shape: f32[2,32], index: 0, kind: input, shape index: {}]
  %s1 = inlined_call_operand.hbm [shape: f32[2,8,32], index: 1, kind: input, shape index: {}]
  %s2 = inlined_call_operand.vmem [shape: s32[2,8], index: 2, kind: input, shape index: {}]
  %s3 = inlined_call_operand.hbm [shape: f32[32,32], index: 3, kind: input, shape index: {}]
  %s4 = inlined_call_operand.vmem [shape: f32[1,32], index: 4, kind: input, shape index: {}]
  %s5 = inlined_call_operand.hbm [shape: f32[2,32], index: 5, kind: output, shape index: {}]
  %s6 = sld [smem:[#allocation0]]
  $region50: #{tpu_custom_call.1} parent=0
    _
  %s8 = ssub.s32 1, %s6
  %s9 = scalar_select 0, %s8, %s6
  $region1: #{tpu_custom_call.1} parent=0
    #allocation5 [shape = 'u8[1024]{0}', space=vmem, size = 0x400, scoped, tag = 'input window, operand 0, single buffered']
    #allocation6 [shape = 's32[1]{0}', space=sflag, size = 0x4, scoped, tag = 'scoped memory for tpu_custom_call.1']
    #allocation7 [shape = 's32[1]{0}', space=sflag, size = 0x4, scoped, tag = 'scoped memory for tpu_custom_call.1']
    #allocation8 [shape = 'u8[8192]{0}', space=vmem, size = 0x2000, scoped, tag = 'input window, operand 1, single buffered']
    #allocation9 [shape = 's32[1]{0}', space=sflag, size = 0x4, scoped, tag = 'scoped memory for tpu_custom_call.1']
    #allocation10 [shape = 'u8[16384]{0}', space=vmem, size = 0x4000, scoped, tag = 'input window, operand 3, single buffered']
    #allocation11 [shape = 'u8[1024]{0}', space=vmem, size = 0x400, scoped, tag = 'output window, operand 0, single buffered']
    %10 = vsyncpa [#allocation6], 0
    %11 = vsyncpa [#allocation9], 0
    %12 = vsyncpa [#allocation7], 0
    // Predicated region
    $region2: #{tpu_custom_call.1} parent=1 // pred_check
      _
    $region3: #{tpu_custom_call.1} parent=1 // pred_check_branch
      %14 = sbr.rel (0) target = $region5
    $region4: #{tpu_custom_call.1} parent=1 // pred_region
      %s16 = ssub.s32 32, 32
      %17 = vsyncadd [#allocation6], %s16
      %s19 = sshll.u32 [#allocation5], 4
      %s20 = int_to_ptr.vmem [resolvable:$true] %s19
      %22 = dma.hbm_to_vmem [thread:$0]  %s0, 32, %s20, [#allocation6]
    $region5: #{tpu_custom_call.1} parent=1 // pred_fallthru
      _
    // Predicated region
    $region6: #{tpu_custom_call.1} parent=1 // pred_check
      _
    $region7: #{tpu_custom_call.1} parent=1 // pred_check_branch
      %24 = sbr.rel (0) target = $region9
    $region8: #{tpu_custom_call.1} parent=1 // pred_region
      %s26 = ssub.s32 256, 256
      %27 = vsyncadd [#allocation9], %s26
      %s28 = sshll.u32 [#allocation8], 4
      %s29 = int_to_ptr.vmem [resolvable:$true] %s28
      %34 = dma.hbm_to_vmem [thread:$0]  %s1, 256, %s29, [#allocation9], 128, 128, 8
    $region9: #{tpu_custom_call.1} parent=1 // pred_fallthru
      _
    // Predicated region
    $region10: #{tpu_custom_call.1} parent=1 // pred_check
      _
    $region11: #{tpu_custom_call.1} parent=1 // pred_check_branch
      %36 = sbr.rel (0) target = $region13
    $region12: #{tpu_custom_call.1} parent=1 // pred_region
      _
    $region13: #{tpu_custom_call.1} parent=1 // pred_fallthru
      _
    // Predicated region
    $region14: #{tpu_custom_call.1} parent=1 // pred_check
      _
    $region15: #{tpu_custom_call.1} parent=1 // pred_check_branch
      %38 = sbr.rel (0) target = $region17
    $region16: #{tpu_custom_call.1} parent=1 // pred_region
      %s40 = ssub.s32 512, 512
      %41 = vsyncadd [#allocation9], %s40
      %s42 = sshll.u32 [#allocation10], 4
      %s43 = int_to_ptr.vmem [resolvable:$true] %s42
      %48 = dma.hbm_to_vmem [thread:$0]  %s3, 512, %s43, [#allocation9], 128, 128, 8
    $region17: #{tpu_custom_call.1} parent=1 // pred_fallthru
      _
    // Predicated region
    $region18: #{tpu_custom_call.1} parent=1 // pred_check
      _
    $region19: #{tpu_custom_call.1} parent=1 // pred_check_branch
      %50 = sbr.rel (0) target = $region21
    $region20: #{tpu_custom_call.1} parent=1 // pred_region
      _
    $region21: #{tpu_custom_call.1} parent=1 // pred_fallthru
      _
    // Predicated region
    $region22: #{tpu_custom_call.1} parent=1 // pred_check
      _
    $region23: #{tpu_custom_call.1} parent=1 // pred_check_branch
      %52 = sbr.rel (0) target = $region25
    $region24: #{tpu_custom_call.1} parent=1 // pred_region
      %53 = dma.done [#allocation6], 32
    $region25: #{tpu_custom_call.1} parent=1 // pred_fallthru
      _
    // Predicated region
    $region26: #{tpu_custom_call.1} parent=1 // pred_check
      _
    $region27: #{tpu_custom_call.1} parent=1 // pred_check_branch
      %55 = sbr.rel (0) target = $region29
    $region28: #{tpu_custom_call.1} parent=1 // pred_region
      %56 = dma.done [#allocation9], 256
    $region29: #{tpu_custom_call.1} parent=1 // pred_fallthru
      _
    // Predicated region
    $region30: #{tpu_custom_call.1} parent=1 // pred_check
      _
    $region31: #{tpu_custom_call.1} parent=1 // pred_check_branch
      %58 = sbr.rel (0) target = $region33
    $region32: #{tpu_custom_call.1} parent=1 // pred_region
      %59 = dma.done [#allocation9], 512
    $region33: #{tpu_custom_call.1} parent=1 // pred_fallthru
      _
    %p60 = scmp.eq.s32.totalorder 0, 0
    // Predicated region
    $region34: #{tpu_custom_call.1} parent=1 // pred_check
      %p61 = pneg %p60
    $region35: #{tpu_custom_call.1} parent=1 // pred_check_branch
      %63 = sbr.rel (%p61) target = $region37
    $region36: #{tpu_custom_call.1} parent=1 // pred_region
      %vm64 = vcmask 1024
      %65 = vst.msk [vmem:[#allocation2] sm:$0x3] %vm64, -1e+30
      %66 = vst.msk [vmem:[#allocation3] sm:$0x3] %vm64, 0.0
      %vm67 = vcmask 254976
      %68 = vst.msk [vmem:[#allocation4] sm:$0x3] %vm67, 0.0
    $region37: #{tpu_custom_call.1} parent=1 // pred_fallthru
      _
    %v69 = vld [vmem:[#allocation8] sm:$0xff]
    %v70 = vld [vmem:[#allocation8 + $0x8] sm:$0xff]
    %v71 = vld [vmem:[#allocation5] sm:$0x3]
    %v72 = vld [vmem:[#allocation10] sm:$0xff]
    %v73 = vld [vmem:[#allocation10 + $0x8] sm:$0xff]
    %v74 = vld [vmem:[#allocation10 + $0x10] sm:$0xff]
    %v75 = vld [vmem:[#allocation10 + $0x18] sm:$0xff]
    %v76 = vld [vmem:[%s4] sm:$0x1]
    %v78 = vlaneseq
    %v79 = vshrl.u32 %v78, 7
    %v80 = vsub.s32 0, %v79
    %v81 = vrot.slane %v76, %v80
    %vm83 = vcmask 261120
    %v85 = vsel %vm83, %v69, 0
    %v88 = vsel %vm83, %v70, 0
    %90 = vmatprep.subr.mxu0 0.0
    %91 = vmatpush1.msra.mxu0 %v72
    %92 = vmatprep.subr.mxu0 0.0
    %93 = vmatpush1.msra.mxu0 %v73
    %94 = vmatprep.subr.mxu0 0.0
    %95 = vmatpush1.msra.mxu0 %v74
    %96 = vmatprep.subr.mxu0 0.0
    %97 = vmatpush1.msra.mxu0 %v75
    %98 = vmatprep.subr.mxu0 0.0
    %99 = vmatpush1.msra.mxu0 0.0
    %100 = vmatprep.subr.mxu0 0.0
    %101 = vmatpush1.msra.mxu0 0.0
    %102 = vmatprep.subr.mxu0 0.0
    %103 = vmatpush1.msra.mxu0 0.0
    %104 = vmatprep.subr.mxu0 0.0
    %105 = vmatpush1.msra.mxu0 0.0
    %106 = vmatprep.subr.mxu0 0.0
    %107 = vmatpush1.msra.mxu0 0.0
    %108 = vmatprep.subr.mxu0 0.0
    %109 = vmatpush1.msra.mxu0 0.0
    %110 = vmatprep.subr.mxu0 0.0
    %111 = vmatpush1.msra.mxu0 0.0
    %112 = vmatprep.subr.mxu0 0.0
    %113 = vmatpush1.msra.mxu0 0.0
    %114 = vmatprep.subr.mxu0 0.0
    %115 = vmatpush1.msra.mxu0 0.0
    %116 = vmatprep.subr.mxu0 0.0
    %117 = vmatpush1.msra.mxu0 0.0
    %118 = vmatprep.subr.mxu0 0.0
    %119 = vmatpush1.msra.mxu0 0.0
    %120 = vmatprep.subr.mxu0 0.0
    %121 = vmatpush1.msra.mxu0 0.0
    %122 = vmatprep.subr.mxu0 0.0
    %123 = vmatpush1.msra.mxu0 0.0
    %124 = vmatprep.subr.mxu0 0.0
    %125 = vmatpush1.msra.mxu0 0.0
    %126 = vmatprep.subr.mxu0 0.0
    %127 = vmatpush1.msra.mxu0 0.0
    %128 = vmatprep.subr.mxu0 0.0
    %129 = vmatpush1.msra.mxu0 0.0
    %130 = vmatprep.subr.mxu0 0.0
    %131 = vmatpush1.msra.mxu0 0.0
    %132 = vmatprep.subr.mxu0 0.0
    %133 = vmatpush1.msra.mxu0 0.0
    %134 = vmatprep.subr.mxu0 0.0
    %135 = vmatpush1.msra.mxu0 0.0
    %136 = vmatprep.subr.mxu0 0.0
    %137 = vmatpush1.msra.mxu0 0.0
    %138 = vmatprep.subr.mxu0 0.0
    %139 = vmatpush1.msra.mxu0 0.0
    %140 = vmatprep.subr.mxu0 0.0
    %141 = vmatpush1.msra.mxu0 0.0
    %142 = vmatprep.subr.mxu0 0.0
    %143 = vmatpush1.msra.mxu0 0.0
    %144 = vmatprep.subr.mxu0 0.0
    %145 = vmatpush1.msra.mxu0 0.0
    %146 = vmatprep.subr.mxu0 0.0
    %147 = vmatpush1.msra.mxu0 0.0
    %148 = vmatprep.subr.mxu0 0.0
    %149 = vmatpush1.msra.mxu0 0.0
    %150 = vmatprep.subr.mxu0 0.0
    %151 = vmatpush1.msra.mxu0 0.0
    %152 = vmatprep.subr.mxu0 0.0
    %153 = vmatpush1.msra.mxu0 0.0
    %154 = vmatprep.mubr.f32.mxu0 0.0
    %155 = vmatmul.mubr.f32.gmra.mrb[0].mxu0 %v85
    %v156 = vpop.f32.mrb[0].mxu0
    %v157 = vadd.f32 %v81, %v156
    %v158 = vpop.f32.mrb[0].mxu0
    %159 = vmatprep.mubr.f32.mxu0 0.0
    %160 = vmatmul.mubr.f32.gmra.mrb[0].mxu0 %v88
    %v161 = vpop.f32.mrb[0].mxu0
    %v162 = vadd.f32 %v81, %v161
    %v163 = vpop.f32.mrb[0].mxu0
    %164 = vdwg.mxu0
    %v165 = vtanh.pop %v157
    %v166 = vtanh.pop %v162
    %v169 = vunpack.c.l.s4 1966171168
    %v170 = vunpack.c.0.s8 %v169
    %v171 = vlaneseq
    %v172 = vshrl.u32 %v171, 7
    %v173 = vsub.s32 %v170, %v172
    %v174 = vrot.slane %v71, %v173
    %v175 = vcombine.high %v174, %v174
    %v177 = vunpack.c.l.s4 1966171168
    %v178 = vunpack.c.0.s8 %v177
    %v179 = vlaneseq
    %v180 = vshrl.u32 %v179, 7
    %v181 = vsub.s32 %v178, %v180
    %v182 = vrot.slane %v174, %v181
    %v184 = vunpack.c.l.s4 1966171168
    %v185 = vunpack.c.0.s8 %v184
    %v186 = vlaneseq
    %v187 = vshrl.u32 %v186, 7
    %v188 = vsub.s32 %v185, %v187
    %v189 = vrot.slane %v175, %v188
    %v190 = vlaneseq
    %v191 = vshrl.u32 %v190, 7
    %v192 = vsub.s32 0, %v191
    %v193 = vrot.slane %v182, %v192
    %v194 = vlaneseq
    %v195 = vshrl.u32 %v194, 7
    %v196 = vsub.s32 0, %v195
    %v197 = vrot.slane %v189, %v196
    %v200 = vmul.f32 %v165, %v193
    %v201 = vmul.f32 %v166, %v197
    %v202 = vsel %vm83, %v200, 0.0
    %203 = vadd.xlane.f32.xlu0 %v202
    %v204 = vpop.xlane.xlu0 %203
    %v205 = vsel %vm83, %v201, 0.0
    %206 = vadd.xlane.f32.xlu0 %v205
    %v207 = vpop.xlane.xlu0 %206
    %v208 = vld [vmem:[%s2] sm:$0x3]
    %vm209 = vcmp.eq.s32.totalorder %v208, 0
    %v212 = vlaneseq
    %v213 = vand.u32 %v212, 127
    %v214 = vlaneseq
    %v215 = vshrl.u32 %v214, 7
    %v216 = vsub.s32 %v213, %v215
    %v217 = vrot.slane %v204, %v216
    %v218 = vlaneseq
    %v219 = vshrl.u32 %v218, 7
    %v220 = vsub.s32 %v213, %v219
    %v221 = vrot.slane %v207, %v220
    %vm222 = vcmask 1041409
    %v223 = vsel %vm222, %v221, %v217
    %v225 = vsel %vm209, -1e+30, %v223
    %v226 = vld [vmem:[#allocation2] sm:$0x3]
    %vm227 = vcmask 58368
    %v228 = vsel %vm227, %v225, -inf
    %229 = vmax.xlane.f32.xlu0 %v228
    %v230 = vpop.xlane.xlu0 %229
    %v231 = vmax.f32 %v226, %v230
    %v232 = vsub.f32 %v226, %v231
    %v233 = vmul.f32 %v232, 1.442695
    %v234 = vpow.pop %v233
    %236 = vset.pattern.permute.xlu0 0
    %237 = vperm.xlu0 %236, %v231
    %v238 = vpop.permute.xlu0 %237
    %v240 = vsub.f32 %v225, %v238
    %v241 = vmul.f32 %v240, 1.442695
    %v242 = vpow.pop %v241
    %v243 = vld [vmem:[#allocation3] sm:$0x3]
    %v244 = vmul.f32 %v234, %v243
    %v245 = vsel %vm227, %v242, 0.0
    %246 = vadd.xlane.f32.xlu0 %v245
    %v247 = vpop.xlane.xlu0 %246
    %v248 = vadd.f32 %v244, %v247
    %vm249 = vcmask 1024
    %250 = vst.msk [vmem:[#allocation3] sm:$0x3] %vm249, %v248
    %v251 = vld [vmem:[#allocation4] sm:$0x3]
    %253 = vset.pattern.permute.xlu0 0
    %254 = vperm.xlu0 %253, %v234
    %v255 = vpop.permute.xlu0 %254
    %v257 = vmul.f32 %v255, %v251
    %v258 = vlaneseq
    %v259 = vshrl.u32 %v258, 7
    %v260 = vsub.s32 0, %v259
    %v261 = vrot.slane %v242, %v260
    %263 = vbcast.lane.b32.xlu0 %v261, 256
    %v264 = vpop.permute.xlu0 %263
    %v265 = vlaneseq
    %v266 = vshrl.u32 %v265, 7
    %v267 = vsub.s32 1, %v266
    %v268 = vrot.slane %v242, %v267
    %270 = vbcast.lane.b32.xlu0 %v268, 256
    %v271 = vpop.permute.xlu0 %270
    %v272 = vmul.f32 %v264, %v69
    %v273 = vmul.f32 %v271, %v70
    %v274 = vsel %vm83, %v272, 0.0
    %v275 = vrot.slane %v274, 4
    %v276 = vadd.f32 %v274, %v275
    %v277 = vrot.slane %v276, 2
    %v278 = vadd.f32 %v276, %v277
    %v279 = vrot.slane %v278, 1
    %v280 = vadd.f32 %v278, %v279
    %v281 = vsel %vm83, %v273, 0.0
    %v282 = vrot.slane %v281, 4
    %v283 = vadd.f32 %v281, %v282
    %v284 = vrot.slane %v283, 2
    %v285 = vadd.f32 %v283, %v284
    %v286 = vrot.slane %v285, 1
    %v287 = vadd.f32 %v285, %v286
    %v290 = vsel %vm222, %v287, %v280
    %v292 = vadd.f32 %v257, %v290
    %vm293 = vcmask 254976
    %294 = vst.msk [vmem:[#allocation4] sm:$0x3] %vm293, %v292
    %295 = vst.msk [vmem:[#allocation2] sm:$0x3] %vm249, %v231
    // Predicated region
    $region38: #{tpu_custom_call.1} parent=1 // pred_check
      %p296 = pneg %p60
    $region39: #{tpu_custom_call.1} parent=1 // pred_check_branch
      %298 = sbr.rel (%p296) target = $region41
    $region40: #{tpu_custom_call.1} parent=1 // pred_region
      %v299 = vld [vmem:[#allocation4] sm:$0x3]
      %v300 = vld [vmem:[#allocation3] sm:$0x3]
      %v301 = vrcp.pop %v300
      %303 = vset.pattern.permute.xlu0 0
      %304 = vperm.xlu0 %303, %v301
      %v305 = vpop.permute.xlu0 %304
      %v307 = vmul.f32 %v299, %v305
      %308 = vst.msk [vmem:[#allocation11] sm:$0x3] %vm293, %v307
    $region41: #{tpu_custom_call.1} parent=1 // pred_fallthru
      _
    // Predicated region
    $region42: #{tpu_custom_call.1} parent=1 // pred_check
      _
    $region43: #{tpu_custom_call.1} parent=1 // pred_check_branch
      %310 = sbr.rel (0) target = $region45
    $region44: #{tpu_custom_call.1} parent=1 // pred_region
      %s312 = ssub.s32 32, 32
      %313 = vsyncadd [#allocation7], %s312
      %s315 = sshll.u32 [#allocation11], 4
      %s316 = int_to_ptr.vmem [resolvable:$true] %s315
      %318 = dma.vmem_to_hbm [thread:$0]  %s316, 32, %s5, [#allocation7]
    $region45: #{tpu_custom_call.1} parent=1 // pred_fallthru
      _
    // Predicated region
    $region46: #{tpu_custom_call.1} parent=1 // pred_check
      _
    $region47: #{tpu_custom_call.1} parent=1 // pred_check_branch
      %320 = sbr.rel (0) target = $region49
    $region48: #{tpu_custom_call.1} parent=1 // pred_region
      %321 = dma.done [#allocation7], 32
    $region49: #{tpu_custom_call.1} parent=1 // pred_fallthru
      _
    %322 = vsyncpa [#allocation6], 1
    %323 = vsyncpa [#allocation9], 1
    %324 = vsyncpa [#allocation7], 1

</llo_original>
